<compile_context>
chip_gen: v7x
topology: tpu7x:2x2x1
jax: 0.10.0
libtpu: 0.0.40
codegen_flags: <defaults>
</compile_context>

<pallas_src>
import functools

import jax
import jax.numpy as jnp
from jax.experimental import pallas as pl
from jax.experimental.pallas import tpu as pltpu


# ---------------------------------------------------------------------------
# Pass 1: global average pool (tiled over HW) + excitation (finalize step).
# ---------------------------------------------------------------------------
def _se_pool_excite_kernel(x_ref, w1_ref, w2_ref, gate_ref, acc_ref,
                           *, hw, hw_tile, inv_hw):
    # x_ref: (B, C, hw_tile)   w1_ref: (C, Cr)   w2_ref: (Cr, C)
    # gate_ref: (B, C) f32     acc_ref: (B, C) f32 scratch (persists over grid)
    k = pl.program_id(0)

    @pl.when(k == 0)
    def _init():
        acc_ref[...] = jnp.zeros_like(acc_ref)

    xt = x_ref[...]
    if hw % hw_tile != 0:
        # Mask out the padded lanes of the last (partial) HW tile.
        pos = jax.lax.broadcasted_iota(jnp.int32, xt.shape, dimension=xt.ndim - 1)
        valid = (k * hw_tile + pos) < hw
        xt = jnp.where(valid, xt, jnp.zeros_like(xt))

    # Accumulate the spatial sum in f32 (per-tile XLU reduce overlaps next DMA).
    acc_ref[...] += jnp.sum(xt, axis=-1, dtype=jnp.float32)

    @pl.when(k == pl.num_programs(0) - 1)
    def _finalize():
        y = acc_ref[...] * inv_hw                                      # (B, C)
        h = jnp.dot(y, w1_ref[...].astype(jnp.float32),
                    preferred_element_type=jnp.float32)                # (B, Cr)
        h = jnp.maximum(h, 0.0)
        s = jnp.dot(h, w2_ref[...].astype(jnp.float32),
                    preferred_element_type=jnp.float32)                # (B, C)
        gate_ref[...] = jax.nn.sigmoid(s)


# ---------------------------------------------------------------------------
# Pass 2: broadcast the (B*C, 1) gate over the spatial (lane) axis.
# ---------------------------------------------------------------------------
def _se_scale_kernel(x_ref, g_ref, o_ref):
    # x_ref/o_ref: (B*C, hw_tile)   g_ref: (B*C, 1) f32
    o_ref[...] = x_ref[...] * g_ref[...].astype(x_ref.dtype)


def _round_up(n, m):
    return (n + m - 1) // m * m


def _pick_hw_tile(hw, b, c, itemsize,
                  max_block_bytes=4 * 1024 * 1024, max_hw_tile=2048):
    """Largest lane tile (multiple of 128, <= 2048) that keeps one block ~<=4MiB,
    accounting for (8,128) sublane padding of both pass layouts."""
    rows_padded = max(_round_up(b * c, 8), b * _round_up(c, 8))
    bytes_per_lane = rows_padded * max(itemsize, 4)
    cap = (max_block_bytes // bytes_per_lane) // 128 * 128
    cap = max(128, min(cap, max_hw_tile))
    if hw <= cap:
        return hw  # full dim is always a legal block shape
    return cap


def se_block(x, w1, w2):
    """x: (B, C, H, W); w1: (C, C//r); w2: (C//r, C) -> (B, C, H, W).

    Weights are stored transposed vs. torch.nn.Linear so the kernel computes
    y @ w1 and h @ w2 directly (matches SEBlock.forward semantics, no bias).
    """
    B, C, H, W = x.shape
    HW = H * W
    Cr = w1.shape[1]
    itemsize = jnp.dtype(x.dtype).itemsize

    hw_tile = _pick_hw_tile(HW, B, C, itemsize)
    num_tiles = pl.cdiv(HW, hw_tile)
    # Explicit VMEM budget with headroom (covers v7x's smaller VMEM too):
    # per step ~ 4 x block_bytes (in + out, double-buffered) with 4 MiB blocks.
    compiler_kwargs = dict(vmem_limit_bytes=32 * 1024 * 1024)

    # ---- Pass 1: pooled sum over HW tiles, excitation on the last step. ----
    gate = pl.pallas_call(
        functools.partial(_se_pool_excite_kernel,
                          hw=HW, hw_tile=hw_tile, inv_hw=1.0 / HW),
        out_shape=jax.ShapeDtypeStruct((B, C), jnp.float32),
        grid=(num_tiles,),
        in_specs=[
            pl.BlockSpec((B, C, hw_tile), lambda k: (0, 0, k)),
            pl.BlockSpec((C, Cr), lambda k: (0, 0)),
            pl.BlockSpec((Cr, C), lambda k: (0, 0)),
        ],
        out_specs=pl.BlockSpec((B, C), lambda k: (0, 0)),
        scratch_shapes=[pltpu.VMEM((B, C), jnp.float32)],
        compiler_params=pltpu.CompilerParams(
            dimension_semantics=("arbitrary",), **compiler_kwargs),
    )(x.reshape(B, C, HW), w1, w2)

    # ---- Pass 2: stream x as (B*C, HW) and scale by the per-row gate. ----
    x2 = x.reshape(B * C, HW)          # free reshape; fills sublanes for small C
    g2 = gate.reshape(B * C, 1)
    out2 = pl.pallas_call(
        _se_scale_kernel,
        out_shape=jax.ShapeDtypeStruct((B * C, HW), x.dtype),
        grid=(num_tiles,),
        in_specs=[
            pl.BlockSpec((B * C, hw_tile), lambda k: (0, k)),
            pl.BlockSpec((B * C, 1), lambda k: (0, 0)),
        ],
        out_specs=pl.BlockSpec((B * C, hw_tile), lambda k: (0, k)),
        compiler_params=pltpu.CompilerParams(
            dimension_semantics=("parallel",), **compiler_kwargs),
    )(x2, g2)

    return out2.reshape(B, C, H, W)


def se_block_ref(x, w1, w2):
    """Pure-JAX reference mirroring the PyTorch forward."""
    y = jnp.mean(x, axis=(2, 3))                 # (B, C)
    h = jnp.maximum(y @ w1, 0.0)                 # (B, C//r)
    s = jax.nn.sigmoid(h @ w2)                   # (B, C)
    return x * s[:, :, None, None]


if __name__ == "__main__":
    B, C, H, W = 2, 4, 16, 16
    reduction = 4
    Cr = max(C // reduction, 1)

    key = jax.random.PRNGKey(0)
    kx, k1, k2 = jax.random.split(key, 3)

    x = jax.random.normal(kx, (B, C, H, W), dtype=jnp.float32)
    # torch Linear weight is (out, in); we keep the transposed (in, out) layout.
    w1 = jax.random.normal(k1, (C, Cr), dtype=jnp.float32) * 0.5
    w2 = jax.random.normal(k2, (Cr, C), dtype=jnp.float32) * 0.5

    out = jax.block_until_ready(se_block(x, w1, w2))
    ref = se_block_ref(x, w1, w2)

    assert out.shape == (B, C, H, W)
    assert jnp.allclose(out, ref, atol=1e-5, rtol=1e-5), "mismatch vs reference"

    print("KERNEL_OK")
</pallas_src>

<mosaic_0001>
module attributes {stable_mosaic.version = 11 : i64} {
  func.func @_se_pool_excite_kernel(%arg0: i32, %arg1: memref<2x4x256xf32, #tpu.memory_space<vmem>>, %arg2: memref<4x1xf32, #tpu.memory_space<vmem>>, %arg3: memref<1x4xf32, #tpu.memory_space<vmem>>, %arg4: memref<2x4xf32, #tpu.memory_space<vmem>>, %arg5: memref<2x4xf32, #tpu.memory_space<vmem>>) attributes {dimension_semantics = [#tpu.dimension_semantics<arbitrary>], iteration_bounds = array<i64: 1>, scalar_prefetch = 0 : i64, scratch_operands = 1 : i64, tpu.core_type = #tpu.core_type<tc>, window_params = [{transform_indices = @transform_0, window_bounds = array<i64: 2, 4, 256>}, {pipeline_mode = #tpu.pipeline_mode<synchronous>, transform_indices = @transform_1, window_bounds = array<i64: 4, 1>}, {pipeline_mode = #tpu.pipeline_mode<synchronous>, transform_indices = @transform_2, window_bounds = array<i64: 1, 4>}, {pipeline_mode = #tpu.pipeline_mode<synchronous>, transform_indices = @transform_3, window_bounds = array<i64: 2, 4>}]} {
    %c0_i32 = arith.constant 0 : i32
    %0 = arith.cmpi eq, %arg0, %c0_i32 : i32
    %1 = arith.extui %0 : i1 to i32
    %c0_i32_0 = arith.constant 0 : i32
    %2 = arith.cmpi ne, %1, %c0_i32_0 : i32
    scf.if %2 {
      %cst_9 = arith.constant 0.000000e+00 : f32
      %11 = vector.broadcast %cst_9 : f32 to vector<2x4xf32>
      %c0_10 = arith.constant 0 : index
      %c0_11 = arith.constant 0 : index
      %12 = vector.load %arg5[%c0_10, %c0_11] : memref<2x4xf32, #tpu.memory_space<vmem>>, vector<2x4xf32>
      tpu.vector_store %arg5[%c0_10, %c0_11], %11 {strides = array<i32>} : memref<2x4xf32, #tpu.memory_space<vmem>>, vector<2x4xf32>,
    } else {
    }
    %c0 = arith.constant 0 : index
    %c0_1 = arith.constant 0 : index
    %c0_2 = arith.constant 0 : index
    %3 = vector.load %arg1[%c0, %c0_1, %c0_2] : memref<2x4x256xf32, #tpu.memory_space<vmem>>, vector<2x4x256xf32>
    %c0_3 = arith.constant 0 : index
    %c0_4 = arith.constant 0 : index
    %4 = vector.load %arg5[%c0_3, %c0_4] : memref<2x4xf32, #tpu.memory_space<vmem>>, vector<2x4xf32>
    %cst = arith.constant dense<0.000000e+00> : vector<2x4xf32>
    %5 = vector.multi_reduction <add>, %3, %cst [2] : vector<2x4x256xf32> to vector<2x4xf32>
    %6 = arith.addf %4, %5 : vector<2x4xf32>
    %c0_5 = arith.constant 0 : index
    %c0_6 = arith.constant 0 : index
    %7 = vector.load %arg5[%c0_5, %c0_6] : memref<2x4xf32, #tpu.memory_space<vmem>>, vector<2x4xf32>
    tpu.vector_store %arg5[%c0_5, %c0_6], %6 {strides = array<i32>} : memref<2x4xf32, #tpu.memory_space<vmem>>, vector<2x4xf32>,
    %c0_i32_7 = arith.constant 0 : i32
    %8 = arith.cmpi eq, %arg0, %c0_i32_7 : i32
    %9 = arith.extui %8 : i1 to i32
    %c0_i32_8 = arith.constant 0 : i32
    %10 = arith.cmpi ne, %9, %c0_i32_8 : i32
    scf.if %10 {
      %c0_9 = arith.constant 0 : index
      %c0_10 = arith.constant 0 : index
      %11 = vector.load %arg5[%c0_9, %c0_10] : memref<2x4xf32, #tpu.memory_space<vmem>>, vector<2x4xf32>
      %cst_11 = arith.constant 3.906250e-03 : f32
      %12 = vector.broadcast %cst_11 : f32 to vector<2x4xf32>
      %13 = arith.mulf %11, %12 : vector<2x4xf32>
      %c0_12 = arith.constant 0 : index
      %c0_13 = arith.constant 0 : index
      %14 = vector.load %arg2[%c0_12, %c0_13] : memref<4x1xf32, #tpu.memory_space<vmem>>, vector<4x1xf32>
      %cst_14 = arith.constant dense<0.000000e+00> : vector<2x1xf32>
      %15 = tpu.matmul %13, %14, %cst_14 {dimension_numbers = #tpu.dot_dimension_numbers<[1], [0], [0], [1], [0, 0, 1, 1], [], []>} : vector<2x4xf32>, vector<4x1xf32>, vector<2x1xf32> -> vector<2x1xf32>
      %cst_15 = arith.constant 0.000000e+00 : f32
      %16 = vector.broadcast %cst_15 : f32 to vector<2x1xf32>
      %17 = arith.maximumf %15, %16 : vector<2x1xf32>
      %c0_16 = arith.constant 0 : index
      %c0_17 = arith.constant 0 : index
      %18 = vector.load %arg3[%c0_16, %c0_17] : memref<1x4xf32, #tpu.memory_space<vmem>>, vector<1x4xf32>
      %cst_18 = arith.constant dense<0.000000e+00> : vector<2x4xf32>
      %19 = tpu.matmul %17, %18, %cst_18 {dimension_numbers = #tpu.dot_dimension_numbers<[1], [0], [0], [1], [0, 0, 1, 1], [], []>} : vector<2x1xf32>, vector<1x4xf32>, vector<2x4xf32> -> vector<2x4xf32>
      %20 = arith.negf %19 : vector<2x4xf32>
      %21 = math.exp %20 : vector<2x4xf32>
      %cst_19 = arith.constant 1.000000e+00 : f32
      %22 = vector.broadcast %cst_19 : f32 to vector<2x4xf32>
      %23 = arith.addf %22, %21 : vector<2x4xf32>
      %24 = arith.divf %22, %23 : vector<2x4xf32>
      %c0_20 = arith.constant 0 : index
      %c0_21 = arith.constant 0 : index
      %25 = vector.load %arg4[%c0_20, %c0_21] : memref<2x4xf32, #tpu.memory_space<vmem>>, vector<2x4xf32>
      tpu.vector_store %arg4[%c0_20, %c0_21], %24 {strides = array<i32>} : memref<2x4xf32, #tpu.memory_space<vmem>>, vector<2x4xf32>,
    } else {
    }
    return
  }
  func.func @transform_0(%arg0: i32) -> (i32, i32, i32) {
    %c0_i32 = arith.constant 0 : i32
    %c0_i32_0 = arith.constant 0 : i32
    %c0_i32_1 = arith.constant 0 : i32
    return %c0_i32, %c0_i32_0, %arg0 : i32, i32, i32
  }
  func.func @transform_1(%arg0: i32) -> (i32, i32) {
    %c0_i32 = arith.constant 0 : i32
    %c0_i32_0 = arith.constant 0 : i32
    %c0_i32_1 = arith.constant 0 : i32
    return %c0_i32, %c0_i32_0 : i32, i32
  }
  func.func @transform_2(%arg0: i32) -> (i32, i32) {
    %c0_i32 = arith.constant 0 : i32
    %c0_i32_0 = arith.constant 0 : i32
    %c0_i32_1 = arith.constant 0 : i32
    return %c0_i32, %c0_i32_0 : i32, i32
  }
  func.func @transform_3(%arg0: i32) -> (i32, i32) {
    %c0_i32 = arith.constant 0 : i32
    %c0_i32_0 = arith.constant 0 : i32
    %c0_i32_1 = arith.constant 0 : i32
    return %c0_i32, %c0_i32_0 : i32, i32
  }
}

</mosaic_0001>

<llo_original>
// kernel: tpu_custom_call.1
$region0: #{tpu_custom_call.1}
  #allocation0 [shape = 'u32[]', space=smem, size = 0x4, offset = 0x4, fixed_abs, tag = 'smem constant byte address 0x4 - core index']
  #allocation1 [shape = 'u32[144,128]{1,0:T(1,128)}', space=vmem, size = 0x12000, scoped, tag = 'internal scratch']
  #allocation2 [shape = 'f32[2,4]{1,0:T(2,128)}', space=vmem, size = 0x400, scoped, tag = 'scratch operand']
  %s0 = inlined_call_operand.hbm [shape: f32[2,4,256], index: 0, kind: input, shape index: {}]
  %s1 = inlined_call_operand.vmem [shape: f32[4,1], index: 1, kind: input, shape index: {}]
  %s2 = inlined_call_operand.vmem [shape: f32[1,4], index: 2, kind: input, shape index: {}]
  %s3 = inlined_call_operand.hbm [shape: f32[2,4], index: 3, kind: output, shape index: {}]
  %s4 = sld [smem:[#allocation0]]
  $region34: #{tpu_custom_call.1} parent=0
    _
  %s6 = ssub.s32 1, %s4
  %s7 = scalar_select 0, %s6, %s4
  $region1: #{tpu_custom_call.1} parent=0
    #allocation3 [shape = 'u8[8192]{0}', space=vmem, size = 0x2000, scoped, tag = 'input window, operand 0, single buffered']
    #allocation4 [shape = 's32[1]{0}', space=sflag, size = 0x4, scoped, tag = 'scoped memory for tpu_custom_call.1']
    #allocation5 [shape = 's32[1]{0}', space=sflag, size = 0x4, scoped, tag = 'scoped memory for tpu_custom_call.1']
    #allocation6 [shape = 'u8[1024]{0}', space=vmem, size = 0x400, scoped, tag = 'output window, operand 0, single buffered']
    %8 = vsyncpa [#allocation4], 0
    %9 = vsyncpa [#allocation5], 0
    // Predicated region
    $region2: #{tpu_custom_call.1} parent=1 // pred_check
      _
    $region3: #{tpu_custom_call.1} parent=1 // pred_check_branch
      %11 = sbr.rel (0) target = $region5
    $region4: #{tpu_custom_call.1} parent=1 // pred_region
      %s13 = ssub.s32 256, 256
      %14 = vsyncadd [#allocation4], %s13
      %s15 = sshll.u32 [#allocation3], 4
      %s16 = int_to_ptr.vmem [resolvable:$true] %s15
      %21 = dma.hbm_to_vmem [thread:$0]  %s0, 256, %s16, [#allocation4], 128, 128, 8
    $region5: #{tpu_custom_call.1} parent=1 // pred_fallthru
      _
    // Predicated region
    $region6: #{tpu_custom_call.1} parent=1 // pred_check
      _
    $region7: #{tpu_custom_call.1} parent=1 // pred_check_branch
      %23 = sbr.rel (0) target = $region9
    $region8: #{tpu_custom_call.1} parent=1 // pred_region
      _
    $region9: #{tpu_custom_call.1} parent=1 // pred_fallthru
      _
    // Predicated region
    $region10: #{tpu_custom_call.1} parent=1 // pred_check
      _
    $region11: #{tpu_custom_call.1} parent=1 // pred_check_branch
      %25 = sbr.rel (0) target = $region13
    $region12: #{tpu_custom_call.1} parent=1 // pred_region
      _
    $region13: #{tpu_custom_call.1} parent=1 // pred_fallthru
      _
    // Predicated region
    $region14: #{tpu_custom_call.1} parent=1 // pred_check
      _
    $region15: #{tpu_custom_call.1} parent=1 // pred_check_branch
      %27 = sbr.rel (0) target = $region17
    $region16: #{tpu_custom_call.1} parent=1 // pred_region
      %28 = dma.done [#allocation4], 256
    $region17: #{tpu_custom_call.1} parent=1 // pred_fallthru
      _
    %p29 = scmp.eq.s32.totalorder 0, 0
    // Predicated region
    $region18: #{tpu_custom_call.1} parent=1 // pred_check
      %p30 = pneg %p29
    $region19: #{tpu_custom_call.1} parent=1 // pred_check_branch
      %32 = sbr.rel (%p30) target = $region21
    $region20: #{tpu_custom_call.1} parent=1 // pred_region
      %vm33 = vcmask 25600
      %34 = vst.msk [vmem:[#allocation2] sm:$0x3] %vm33, 0.0
    $region21: #{tpu_custom_call.1} parent=1 // pred_fallthru
      _
    %v35 = vld [vmem:[#allocation3] sm:$0xff]
    %v36 = vld [vmem:[#allocation3 + $0x8] sm:$0xff]
    %v37 = vld [vmem:[#allocation2] sm:$0x3]
    %v40 = vcombine.high %v35, %v35
    %v41 = vcombine.high %v36, %v36
    %vm44 = vcmask 1043456
    %v45 = vsel %vm44, %v35, 0.0
    %v46 = vsel %vm44, %v40, 0.0
    %v47 = vadd.f32 %v45, %v46
    %48 = vadd.xlane.f32.xlu0 %v47
    %v49 = vpop.xlane.xlu0 %48
    %v50 = vsel %vm44, %v36, 0.0
    %v51 = vsel %vm44, %v41, 0.0
    %v52 = vadd.f32 %v50, %v51
    %53 = vadd.xlane.f32.xlu0 %v52
    %v54 = vpop.xlane.xlu0 %53
    %v57 = vlaneseq
    %v58 = vand.u32 %v57, 127
    %v59 = vlaneseq
    %v60 = vshrl.u32 %v59, 7
    %v61 = vsub.s32 %v58, %v60
    %v62 = vrot.slane %v49, %v61
    %v63 = vlaneseq
    %v64 = vshrl.u32 %v63, 7
    %v65 = vsub.s32 %v58, %v64
    %v66 = vrot.slane %v54, %v65
    %vm67 = vcmask 1041409
    %v68 = vsel %vm67, %v66, %v62
    %v70 = vadd.f32 %v37, %v68
    %vm71 = vcmask 25600
    %72 = vst.msk [vmem:[#allocation2] sm:$0x3] %vm71, %v70
    // Predicated region
    $region22: #{tpu_custom_call.1} parent=1 // pred_check
      %p73 = pneg %p29
    $region23: #{tpu_custom_call.1} parent=1 // pred_check_branch
      %75 = sbr.rel (%p73) target = $region25
    $region24: #{tpu_custom_call.1} parent=1 // pred_region
      %v76 = vld [vmem:[#allocation2] sm:$0x3]
      %v77 = vmul.f32 %v76, 0.00390625
      %v78 = vld [vmem:[%s1] sm:$0xf]
      %vm79 = vcmask 31744
      %v81 = vsel %vm79, %v77, 0
      %v84 = vsel %vm44, %v78, 0
      %86 = vmatprep.subr.mxu0 0.0
      %87 = vmatpush1.msra.mxu0 %v84
      %88 = vmatprep.subr.mxu0 0.0
      %89 = vmatpush1.msra.mxu0 0.0
      %90 = vmatprep.subr.mxu0 0.0
      %91 = vmatpush1.msra.mxu0 0.0
      %92 = vmatprep.subr.mxu0 0.0
      %93 = vmatpush1.msra.mxu0 0.0
      %94 = vmatprep.subr.mxu0 0.0
      %95 = vmatpush1.msra.mxu0 0.0
      %96 = vmatprep.subr.mxu0 0.0
      %97 = vmatpush1.msra.mxu0 0.0
      %98 = vmatprep.subr.mxu0 0.0
      %99 = vmatpush1.msra.mxu0 0.0
      %100 = vmatprep.subr.mxu0 0.0
      %101 = vmatpush1.msra.mxu0 0.0
      %102 = vmatprep.subr.mxu0 0.0
      %103 = vmatpush1.msra.mxu0 0.0
      %104 = vmatprep.subr.mxu0 0.0
      %105 = vmatpush1.msra.mxu0 0.0
      %106 = vmatprep.subr.mxu0 0.0
      %107 = vmatpush1.msra.mxu0 0.0
      %108 = vmatprep.subr.mxu0 0.0
      %109 = vmatpush1.msra.mxu0 0.0
      %110 = vmatprep.subr.mxu0 0.0
      %111 = vmatpush1.msra.mxu0 0.0
      %112 = vmatprep.subr.mxu0 0.0
      %113 = vmatpush1.msra.mxu0 0.0
      %114 = vmatprep.subr.mxu0 0.0
      %115 = vmatpush1.msra.mxu0 0.0
      %116 = vmatprep.subr.mxu0 0.0
      %117 = vmatpush1.msra.mxu0 0.0
      %118 = vmatprep.subr.mxu0 0.0
      %119 = vmatpush1.msra.mxu0 0.0
      %120 = vmatprep.subr.mxu0 0.0
      %121 = vmatpush1.msra.mxu0 0.0
      %122 = vmatprep.subr.mxu0 0.0
      %123 = vmatpush1.msra.mxu0 0.0
      %124 = vmatprep.subr.mxu0 0.0
      %125 = vmatpush1.msra.mxu0 0.0
      %126 = vmatprep.subr.mxu0 0.0
      %127 = vmatpush1.msra.mxu0 0.0
      %128 = vmatprep.subr.mxu0 0.0
      %129 = vmatpush1.msra.mxu0 0.0
      %130 = vmatprep.subr.mxu0 0.0
      %131 = vmatpush1.msra.mxu0 0.0
      %132 = vmatprep.subr.mxu0 0.0
      %133 = vmatpush1.msra.mxu0 0.0
      %134 = vmatprep.subr.mxu0 0.0
      %135 = vmatpush1.msra.mxu0 0.0
      %136 = vmatprep.subr.mxu0 0.0
      %137 = vmatpush1.msra.mxu0 0.0
      %138 = vmatprep.subr.mxu0 0.0
      %139 = vmatpush1.msra.mxu0 0.0
      %140 = vmatprep.subr.mxu0 0.0
      %141 = vmatpush1.msra.mxu0 0.0
      %142 = vmatprep.subr.mxu0 0.0
      %143 = vmatpush1.msra.mxu0 0.0
      %144 = vmatprep.subr.mxu0 0.0
      %145 = vmatpush1.msra.mxu0 0.0
      %146 = vmatprep.subr.mxu0 0.0
      %147 = vmatpush1.msra.mxu0 0.0
      %148 = vmatprep.subr.mxu0 0.0
      %149 = vmatpush1.msra.mxu0 0.0
      %150 = vmatprep.mubr.f32.mxu0 0.0
      %151 = vmatmul.mubr.f32.gmra.mrb[0].mxu0 %v81
      %v152 = vpop.f32.mrb[0].mxu0
      %v153 = vadd.f32 0.0, %v152
      %v154 = vpop.f32.mrb[0].mxu0
      %155 = vdwg.mxu0
      %v156 = vmax.f32 %v153, 0.0
      %v157 = vld [vmem:[%s2] sm:$0x1]
      %vm158 = vcmask 7168
      %v160 = vsel %vm158, %v156, 0
      %vm162 = vcmask 1040384
      %v164 = vsel %vm162, %v157, 0
      %166 = vmatprep.subr.mxu0 0.0
      %167 = vmatpush1.msra.mxu0 %v164
      %168 = vmatprep.subr.mxu0 0.0
      %169 = vmatpush1.msra.mxu0 0.0
      %170 = vmatprep.subr.mxu0 0.0
      %171 = vmatpush1.msra.mxu0 0.0
      %172 = vmatprep.subr.mxu0 0.0
      %173 = vmatpush1.msra.mxu0 0.0
      %174 = vmatprep.subr.mxu0 0.0
      %175 = vmatpush1.msra.mxu0 0.0
      %176 = vmatprep.subr.mxu0 0.0
      %177 = vmatpush1.msra.mxu0 0.0
      %178 = vmatprep.subr.mxu0 0.0
      %179 = vmatpush1.msra.mxu0 0.0
      %180 = vmatprep.subr.mxu0 0.0
      %181 = vmatpush1.msra.mxu0 0.0
      %182 = vmatprep.subr.mxu0 0.0
      %183 = vmatpush1.msra.mxu0 0.0
      %184 = vmatprep.subr.mxu0 0.0
      %185 = vmatpush1.msra.mxu0 0.0
      %186 = vmatprep.subr.mxu0 0.0
      %187 = vmatpush1.msra.mxu0 0.0
      %188 = vmatprep.subr.mxu0 0.0
      %189 = vmatpush1.msra.mxu0 0.0
      %190 = vmatprep.subr.mxu0 0.0
      %191 = vmatpush1.msra.mxu0 0.0
      %192 = vmatprep.subr.mxu0 0.0
      %193 = vmatpush1.msra.mxu0 0.0
      %194 = vmatprep.subr.mxu0 0.0
      %195 = vmatpush1.msra.mxu0 0.0
      %196 = vmatprep.subr.mxu0 0.0
      %197 = vmatpush1.msra.mxu0 0.0
      %198 = vmatprep.subr.mxu0 0.0
      %199 = vmatpush1.msra.mxu0 0.0
      %200 = vmatprep.subr.mxu0 0.0
      %201 = vmatpush1.msra.mxu0 0.0
      %202 = vmatprep.subr.mxu0 0.0
      %203 = vmatpush1.msra.mxu0 0.0
      %204 = vmatprep.subr.mxu0 0.0
      %205 = vmatpush1.msra.mxu0 0.0
      %206 = vmatprep.subr.mxu0 0.0
      %207 = vmatpush1.msra.mxu0 0.0
      %208 = vmatprep.subr.mxu0 0.0
      %209 = vmatpush1.msra.mxu0 0.0
      %210 = vmatprep.subr.mxu0 0.0
      %211 = vmatpush1.msra.mxu0 0.0
      %212 = vmatprep.subr.mxu0 0.0
      %213 = vmatpush1.msra.mxu0 0.0
      %214 = vmatprep.subr.mxu0 0.0
      %215 = vmatpush1.msra.mxu0 0.0
      %216 = vmatprep.subr.mxu0 0.0
      %217 = vmatpush1.msra.mxu0 0.0
      %218 = vmatprep.subr.mxu0 0.0
      %219 = vmatpush1.msra.mxu0 0.0
      %220 = vmatprep.subr.mxu0 0.0
      %221 = vmatpush1.msra.mxu0 0.0
      %222 = vmatprep.subr.mxu0 0.0
      %223 = vmatpush1.msra.mxu0 0.0
      %224 = vmatprep.subr.mxu0 0.0
      %225 = vmatpush1.msra.mxu0 0.0
      %226 = vmatprep.subr.mxu0 0.0
      %227 = vmatpush1.msra.mxu0 0.0
      %228 = vmatprep.subr.mxu0 0.0
      %229 = vmatpush1.msra.mxu0 0.0
      %230 = vmatprep.mubr.f32.mxu0 0.0
      %231 = vmatmul.mubr.f32.gmra.mrb[0].mxu0 %v160
      %v232 = vpop.f32.mrb[0].mxu0
      %v233 = vadd.f32 0.0, %v232
      %v234 = vpop.f32.mrb[0].mxu0
      %235 = vdwg.mxu0
      %v236 = vxor.u32 %v233, 2147483648
      %v237 = vmul.f32 %v236, 1.442695
      %v238 = vpow.pop %v237
      %v239 = vadd.f32 %v238, 1.0
      %v240 = vrcp.pop %v239
      %v241 = vmul.f32 1.0, %v240
      %242 = vst.msk [vmem:[#allocation6] sm:$0x3] %vm71, %v241
    $region25: #{tpu_custom_call.1} parent=1 // pred_fallthru
      _
    // Predicated region
    $region26: #{tpu_custom_call.1} parent=1 // pred_check
      _
    $region27: #{tpu_custom_call.1} parent=1 // pred_check_branch
      %244 = sbr.rel (0) target = $region29
    $region28: #{tpu_custom_call.1} parent=1 // pred_region
      %s246 = ssub.s32 32, 32
      %247 = vsyncadd [#allocation5], %s246
      %s249 = sshll.u32 [#allocation6], 4
      %s250 = int_to_ptr.vmem [resolvable:$true] %s249
      %252 = dma.vmem_to_hbm [thread:$0]  %s250, 32, %s3, [#allocation5]
    $region29: #{tpu_custom_call.1} parent=1 // pred_fallthru
      _
    // Predicated region
    $region30: #{tpu_custom_call.1} parent=1 // pred_check
      _
    $region31: #{tpu_custom_call.1} parent=1 // pred_check_branch
      %254 = sbr.rel (0) target = $region33
    $region32: #{tpu_custom_call.1} parent=1 // pred_region
      %255 = dma.done [#allocation5], 32
    $region33: #{tpu_custom_call.1} parent=1 // pred_fallthru
      _
    %256 = vsyncpa [#allocation4], 1
    %257 = vsyncpa [#allocation5], 1

</llo_original>
